<compile_context>
chip_gen: v6e
topology: v6e:2x2x1
jax: 0.10.0
libtpu: 0.0.40
codegen_flags: <defaults>
</compile_context>

<pallas_src>
import functools

import jax
import jax.numpy as jnp
import numpy as np
from jax.experimental import pallas as pl
from jax.experimental.pallas import tpu as pltpu


def _round_up(x, m):
    return ((x + m - 1) // m) * m


# ----------------------------------------------------------------------------
# Activation: fid == 0  ->  relu(x)^2 - relu(x - 0.5)^2   (always fp32 math)
# ----------------------------------------------------------------------------
def f_act(x):
    r0 = jnp.maximum(x, 0.0)
    r1 = jnp.maximum(x - 0.5, 0.0)
    return r0 * r0 - r1 * r1


# ----------------------------------------------------------------------------
# Pallas kernel: full ODENet forward for one batch tile (batch on lanes).
#   refs = (x_ref, w0, b0, w1, b1, ..., w_{nL-1}, b_{nL-1}, out_ref)
#   x_ref : (nVar, tile_n)   mxu_dtype
#   w_i   : (out_i, in_i)    mxu_dtype   (PyTorch layout)
#   b_i   : (out_i, 1)       float32     (broadcasts along lanes)
#   out   : (nVar, tile_n)   float32
# ----------------------------------------------------------------------------
def odenet_kernel(*refs, n_layers, resnet, mxu_dtype):
    x_ref = refs[0]
    out_ref = refs[-1]
    p = refs[1:-1]  # alternating weight / bias refs

    # layer 0: nVar -> hidden, activation only.  fp32 accumulation on the MXU.
    h = f_act(
        jnp.dot(p[0][...], x_ref[...], preferred_element_type=jnp.float32)
        + p[1][...]
    )

    # middle layers: hidden -> hidden, activation + ResNet skip (fp32 chain).
    for i in range(1, n_layers - 1):
        z = (
            jnp.dot(p[2 * i][...], h.astype(mxu_dtype),
                    preferred_element_type=jnp.float32)
            + p[2 * i + 1][...]
        )
        h = f_act(z) + resnet * h

    # last layer: hidden -> nVar, no activation.
    # NOTE: for n_layers == 1 this re-applies layer 0 to the activated output,
    # which is literally what the PyTorch forward does (layers[0] twice).
    out = (
        jnp.dot(p[2 * (n_layers - 1)][...], h.astype(mxu_dtype),
                preferred_element_type=jnp.float32)
        + p[2 * (n_layers - 1) + 1][...]
    )
    out_ref[...] = out.astype(out_ref.dtype)


# ----------------------------------------------------------------------------
# Parameter init mirroring the PyTorch __init__:
#   xavier_uniform_(weight, gain) and uniform_(bias, 0, gain)
# Weights are kept in PyTorch (out_dim, in_dim) layout; biases as (out_dim, 1).
# ----------------------------------------------------------------------------
def init_odenet_params(key, n_nodes, init_gain=0.01):
    n_nodes = np.asarray(n_nodes, dtype=int)
    nL = n_nodes.size
    nVar = int(n_nodes[0])
    dims = np.zeros(nL + 1, dtype=int)
    dims[:nL] = n_nodes
    dims[nL] = nVar

    params = []
    for i in range(nL):
        fan_in, fan_out = int(dims[i]), int(dims[i + 1])
        key, kw, kb = jax.random.split(key, 3)
        a = init_gain * np.sqrt(6.0 / (fan_in + fan_out))
        w = jax.random.uniform(kw, (fan_out, fan_in), jnp.float32, -a, a)
        b = jax.random.uniform(kb, (fan_out, 1), jnp.float32, 0.0, init_gain)
        params.append((w, b))
    return params


# ----------------------------------------------------------------------------
# Wrapper: layout transform + pallas_call plumbing
# ----------------------------------------------------------------------------
def odenet_forward(x, params, *, resnet=1.0, tile_n=512,
                   compute_dtype=jnp.float32):
    """Pallas ODENet forward.  x has shape (..., nVar).

    compute_dtype: dtype fed to the MXU (jnp.float32 or jnp.bfloat16).  The
    accumulator, activation math and residual chain stay fp32.
    """
    n_layers = len(params)
    nVar = params[0][0].shape[1]
    orig_shape = x.shape

    # (..., nVar) -> (nVar, N): put the batch on the lane (last) axis.
    xT = x.reshape(-1, nVar).astype(jnp.float32).T
    n_rows = xT.shape[1]

    # lane-dense batch tile: multiple of 128, but don't over-pad tiny inputs.
    tile = max(128, min(_round_up(tile_n, 128), _round_up(max(n_rows, 1), 128)))
    n_total = _round_up(max(n_rows, 1), tile)
    if n_total != n_rows:
        xT = jnp.pad(xT, ((0, 0), (0, n_total - n_rows)))
    xT = xT.astype(compute_dtype)
    grid = (n_total // tile,)

    # flatten params -> (w0, b0, w1, b1, ...); weights in MXU dtype, biases fp32
    flat_params = []
    for w, b in params:
        flat_params += [w.astype(compute_dtype), b.astype(jnp.float32)]

    in_specs = [pl.BlockSpec((nVar, tile), lambda i: (0, i))]
    for arr in flat_params:
        # weights / biases are tiny: whole array resident every grid step
        in_specs.append(pl.BlockSpec(arr.shape, lambda i: (0, 0)))
    out_spec = pl.BlockSpec((nVar, tile), lambda i: (0, i))

    # advisory cost hint for the XLA scheduler
    matmul_flops = int(sum(2 * w.shape[0] * w.shape[1] * n_total
                           for w, _ in params))
    bytes_accessed = int(
        xT.size * xT.dtype.itemsize
        + n_total * nVar * 4
        + sum(a.size * a.dtype.itemsize for a in flat_params)
    )
    cost = pl.CostEstimate(flops=matmul_flops, transcendentals=0,
                           bytes_accessed=bytes_accessed)

    kernel = functools.partial(odenet_kernel, n_layers=n_layers,
                               resnet=float(resnet), mxu_dtype=compute_dtype)

    out = pl.pallas_call(
        kernel,
        out_shape=jax.ShapeDtypeStruct((nVar, n_total), jnp.float32),
        grid_spec=pltpu.PrefetchScalarGridSpec(
            num_scalar_prefetch=0,
            grid=grid,
            in_specs=in_specs,
            out_specs=out_spec,
        ),
        compiler_params=pltpu.CompilerParams(
            dimension_semantics=("parallel",),
        ),
        cost_estimate=cost,
    )(xT, *flat_params)

    return out[:, :n_rows].T.reshape(orig_shape)


# ----------------------------------------------------------------------------
# Pure-JAX reference for a sanity check
# ----------------------------------------------------------------------------
def odenet_forward_ref(x, params, resnet=1.0):
    nVar = params[0][0].shape[1]
    shape = x.shape
    h = x.reshape(-1, nVar).astype(jnp.float32)
    w0, b0 = params[0]
    h = f_act(h @ w0.T + b0[:, 0])
    for i in range(1, len(params) - 1):
        w, b = params[i]
        h = f_act(h @ w.T + b[:, 0]) + resnet * h
    w_l, b_l = params[-1]
    h = h @ w_l.T + b_l[:, 0]
    return h.reshape(shape)


if __name__ == "__main__":
    # n_nodes = [nVar, hidden, hidden, hidden]  ->  nL = 4 linear layers
    n_nodes = [8, 32, 32, 32]
    nVar = n_nodes[0]

    key = jax.random.PRNGKey(0)
    key, kp, kx = jax.random.split(key, 3)
    params = init_odenet_params(kp, n_nodes, init_gain=0.01)

    # small input: (batch=2, seq=8, nVar=8) -> flattened to (16, 8) inside
    x = jax.random.normal(kx, (2, 8, nVar), jnp.float32)

    y_ref = odenet_forward_ref(x, params, resnet=1.0)

    # fp32 path (faithful to the PyTorch module)
    y = jax.block_until_ready(odenet_forward(x, params, resnet=1.0))
    assert y.shape == x.shape
    np.testing.assert_allclose(np.asarray(y), np.asarray(y_ref),
                               rtol=1e-5, atol=1e-6)

    # bf16-MXU fast path (v6e/v7x): fp32 accumulate + fp32 activation/residual
    y_bf = jax.block_until_ready(
        odenet_forward(x, params, resnet=1.0, compute_dtype=jnp.bfloat16))
    np.testing.assert_allclose(np.asarray(y_bf), np.asarray(y_ref),
                               rtol=5e-2, atol=1e-3)

    print("KERNEL_OK")
</pallas_src>

<mosaic_0001>
module attributes {stable_mosaic.version = 11 : i64} {
  func.func @odenet_kernel(%arg0: i32, %arg1: memref<8x128xf32, #tpu.memory_space<vmem>>, %arg2: memref<32x8xf32, #tpu.memory_space<vmem>>, %arg3: memref<32x1xf32, #tpu.memory_space<vmem>>, %arg4: memref<32x32xf32, #tpu.memory_space<vmem>>, %arg5: memref<32x1xf32, #tpu.memory_space<vmem>>, %arg6: memref<32x32xf32, #tpu.memory_space<vmem>>, %arg7: memref<32x1xf32, #tpu.memory_space<vmem>>, %arg8: memref<8x32xf32, #tpu.memory_space<vmem>>, %arg9: memref<8x1xf32, #tpu.memory_space<vmem>>, %arg10: memref<8x128xf32, #tpu.memory_space<vmem>>) attributes {dimension_semantics = [#tpu.dimension_semantics<parallel>], iteration_bounds = array<i64: 1>, scalar_prefetch = 0 : i64, scratch_operands = 0 : i64, tpu.core_type = #tpu.core_type<tc>, window_params = [{transform_indices = @transform_0, window_bounds = array<i64: 8, 128>}, {pipeline_mode = #tpu.pipeline_mode<synchronous>, transform_indices = @transform_1, window_bounds = array<i64: 32, 8>}, {pipeline_mode = #tpu.pipeline_mode<synchronous>, transform_indices = @transform_2, window_bounds = array<i64: 32, 1>}, {pipeline_mode = #tpu.pipeline_mode<synchronous>, transform_indices = @transform_3, window_bounds = array<i64: 32, 32>}, {pipeline_mode = #tpu.pipeline_mode<synchronous>, transform_indices = @transform_4, window_bounds = array<i64: 32, 1>}, {pipeline_mode = #tpu.pipeline_mode<synchronous>, transform_indices = @transform_5, window_bounds = array<i64: 32, 32>}, {pipeline_mode = #tpu.pipeline_mode<synchronous>, transform_indices = @transform_6, window_bounds = array<i64: 32, 1>}, {pipeline_mode = #tpu.pipeline_mode<synchronous>, transform_indices = @transform_7, window_bounds = array<i64: 8, 32>}, {pipeline_mode = #tpu.pipeline_mode<synchronous>, transform_indices = @transform_8, window_bounds = array<i64: 8, 1>}, {transform_indices = @transform_9, window_bounds = array<i64: 8, 128>}]} {
    %c0 = arith.constant 0 : index
    %c0_0 = arith.constant 0 : index
    %0 = vector.load %arg2[%c0, %c0_0] : memref<32x8xf32, #tpu.memory_space<vmem>>, vector<32x8xf32>
    %c0_1 = arith.constant 0 : index
    %c0_2 = arith.constant 0 : index
    %1 = vector.load %arg1[%c0_1, %c0_2] : memref<8x128xf32, #tpu.memory_space<vmem>>, vector<8x128xf32>
    %cst = arith.constant dense<0.000000e+00> : vector<32x128xf32>
    %2 = tpu.matmul %0, %1, %cst {dimension_numbers = #tpu.dot_dimension_numbers<[1], [0], [0], [1], [0, 0, 1, 1], [], []>} : vector<32x8xf32>, vector<8x128xf32>, vector<32x128xf32> -> vector<32x128xf32>
    %c0_3 = arith.constant 0 : index
    %c0_4 = arith.constant 0 : index
    %3 = vector.load %arg3[%c0_3, %c0_4] : memref<32x1xf32, #tpu.memory_space<vmem>>, vector<32x1xf32>
    %4 = vector.broadcast %3 : vector<32x1xf32> to vector<32x128xf32>
    %5 = arith.addf %2, %4 : vector<32x128xf32>
    %cst_5 = arith.constant 0.000000e+00 : f32
    %6 = vector.broadcast %cst_5 : f32 to vector<32x128xf32>
    %7 = arith.maximumf %5, %6 : vector<32x128xf32>
    %cst_6 = arith.constant 5.000000e-01 : f32
    %8 = vector.broadcast %cst_6 : f32 to vector<32x128xf32>
    %9 = arith.subf %5, %8 : vector<32x128xf32>
    %cst_7 = arith.constant 0.000000e+00 : f32
    %10 = vector.broadcast %cst_7 : f32 to vector<32x128xf32>
    %11 = arith.maximumf %9, %10 : vector<32x128xf32>
    %12 = arith.mulf %7, %7 : vector<32x128xf32>
    %13 = arith.mulf %11, %11 : vector<32x128xf32>
    %14 = arith.subf %12, %13 : vector<32x128xf32>
    %c0_8 = arith.constant 0 : index
    %c0_9 = arith.constant 0 : index
    %15 = vector.load %arg4[%c0_8, %c0_9] : memref<32x32xf32, #tpu.memory_space<vmem>>, vector<32x32xf32>
    %cst_10 = arith.constant dense<0.000000e+00> : vector<32x128xf32>
    %16 = tpu.matmul %15, %14, %cst_10 {dimension_numbers = #tpu.dot_dimension_numbers<[1], [0], [0], [1], [0, 0, 1, 1], [], []>} : vector<32x32xf32>, vector<32x128xf32>, vector<32x128xf32> -> vector<32x128xf32>
    %c0_11 = arith.constant 0 : index
    %c0_12 = arith.constant 0 : index
    %17 = vector.load %arg5[%c0_11, %c0_12] : memref<32x1xf32, #tpu.memory_space<vmem>>, vector<32x1xf32>
    %18 = vector.broadcast %17 : vector<32x1xf32> to vector<32x128xf32>
    %19 = arith.addf %16, %18 : vector<32x128xf32>
    %cst_13 = arith.constant 0.000000e+00 : f32
    %20 = vector.broadcast %cst_13 : f32 to vector<32x128xf32>
    %21 = arith.maximumf %19, %20 : vector<32x128xf32>
    %cst_14 = arith.constant 5.000000e-01 : f32
    %22 = vector.broadcast %cst_14 : f32 to vector<32x128xf32>
    %23 = arith.subf %19, %22 : vector<32x128xf32>
    %cst_15 = arith.constant 0.000000e+00 : f32
    %24 = vector.broadcast %cst_15 : f32 to vector<32x128xf32>
    %25 = arith.maximumf %23, %24 : vector<32x128xf32>
    %26 = arith.mulf %21, %21 : vector<32x128xf32>
    %27 = arith.mulf %25, %25 : vector<32x128xf32>
    %28 = arith.subf %26, %27 : vector<32x128xf32>
    %cst_16 = arith.constant 1.000000e+00 : f32
    %29 = vector.broadcast %cst_16 : f32 to vector<32x128xf32>
    %30 = arith.mulf %29, %14 : vector<32x128xf32>
    %31 = arith.addf %28, %30 : vector<32x128xf32>
    %c0_17 = arith.constant 0 : index
    %c0_18 = arith.constant 0 : index
    %32 = vector.load %arg6[%c0_17, %c0_18] : memref<32x32xf32, #tpu.memory_space<vmem>>, vector<32x32xf32>
    %cst_19 = arith.constant dense<0.000000e+00> : vector<32x128xf32>
    %33 = tpu.matmul %32, %31, %cst_19 {dimension_numbers = #tpu.dot_dimension_numbers<[1], [0], [0], [1], [0, 0, 1, 1], [], []>} : vector<32x32xf32>, vector<32x128xf32>, vector<32x128xf32> -> vector<32x128xf32>
    %c0_20 = arith.constant 0 : index
    %c0_21 = arith.constant 0 : index
    %34 = vector.load %arg7[%c0_20, %c0_21] : memref<32x1xf32, #tpu.memory_space<vmem>>, vector<32x1xf32>
    %35 = vector.broadcast %34 : vector<32x1xf32> to vector<32x128xf32>
    %36 = arith.addf %33, %35 : vector<32x128xf32>
    %cst_22 = arith.constant 0.000000e+00 : f32
    %37 = vector.broadcast %cst_22 : f32 to vector<32x128xf32>
    %38 = arith.maximumf %36, %37 : vector<32x128xf32>
    %cst_23 = arith.constant 5.000000e-01 : f32
    %39 = vector.broadcast %cst_23 : f32 to vector<32x128xf32>
    %40 = arith.subf %36, %39 : vector<32x128xf32>
    %cst_24 = arith.constant 0.000000e+00 : f32
    %41 = vector.broadcast %cst_24 : f32 to vector<32x128xf32>
    %42 = arith.maximumf %40, %41 : vector<32x128xf32>
    %43 = arith.mulf %38, %38 : vector<32x128xf32>
    %44 = arith.mulf %42, %42 : vector<32x128xf32>
    %45 = arith.subf %43, %44 : vector<32x128xf32>
    %cst_25 = arith.constant 1.000000e+00 : f32
    %46 = vector.broadcast %cst_25 : f32 to vector<32x128xf32>
    %47 = arith.mulf %46, %31 : vector<32x128xf32>
    %48 = arith.addf %45, %47 : vector<32x128xf32>
    %c0_26 = arith.constant 0 : index
    %c0_27 = arith.constant 0 : index
    %49 = vector.load %arg8[%c0_26, %c0_27] : memref<8x32xf32, #tpu.memory_space<vmem>>, vector<8x32xf32>
    %cst_28 = arith.constant dense<0.000000e+00> : vector<8x128xf32>
    %50 = tpu.matmul %49, %48, %cst_28 {dimension_numbers = #tpu.dot_dimension_numbers<[1], [0], [0], [1], [0, 0, 1, 1], [], []>} : vector<8x32xf32>, vector<32x128xf32>, vector<8x128xf32> -> vector<8x128xf32>
    %c0_29 = arith.constant 0 : index
    %c0_30 = arith.constant 0 : index
    %51 = vector.load %arg9[%c0_29, %c0_30] : memref<8x1xf32, #tpu.memory_space<vmem>>, vector<8x1xf32>
    %52 = vector.broadcast %51 : vector<8x1xf32> to vector<8x128xf32>
    %53 = arith.addf %50, %52 : vector<8x128xf32>
    %c0_31 = arith.constant 0 : index
    %c0_32 = arith.constant 0 : index
    %54 = vector.load %arg10[%c0_31, %c0_32] : memref<8x128xf32, #tpu.memory_space<vmem>>, vector<8x128xf32>
    tpu.vector_store %arg10[%c0_31, %c0_32], %53 {strides = array<i32>} : memref<8x128xf32, #tpu.memory_space<vmem>>, vector<8x128xf32>,
    return
  }
  func.func @transform_0(%arg0: i32) -> (i32, i32) {
    %c0_i32 = arith.constant 0 : i32
    %c0_i32_0 = arith.constant 0 : i32
    return %c0_i32, %arg0 : i32, i32
  }
  func.func @transform_1(%arg0: i32) -> (i32, i32) {
    %c0_i32 = arith.constant 0 : i32
    %c0_i32_0 = arith.constant 0 : i32
    %c0_i32_1 = arith.constant 0 : i32
    return %c0_i32, %c0_i32_0 : i32, i32
  }
  func.func @transform_2(%arg0: i32) -> (i32, i32) {
    %c0_i32 = arith.constant 0 : i32
    %c0_i32_0 = arith.constant 0 : i32
    %c0_i32_1 = arith.constant 0 : i32
    return %c0_i32, %c0_i32_0 : i32, i32
  }
  func.func @transform_3(%arg0: i32) -> (i32, i32) {
    %c0_i32 = arith.constant 0 : i32
    %c0_i32_0 = arith.constant 0 : i32
    %c0_i32_1 = arith.constant 0 : i32
    return %c0_i32, %c0_i32_0 : i32, i32
  }
  func.func @transform_4(%arg0: i32) -> (i32, i32) {
    %c0_i32 = arith.constant 0 : i32
    %c0_i32_0 = arith.constant 0 : i32
    %c0_i32_1 = arith.constant 0 : i32
    return %c0_i32, %c0_i32_0 : i32, i32
  }
  func.func @transform_5(%arg0: i32) -> (i32, i32) {
    %c0_i32 = arith.constant 0 : i32
    %c0_i32_0 = arith.constant 0 : i32
    %c0_i32_1 = arith.constant 0 : i32
    return %c0_i32, %c0_i32_0 : i32, i32
  }
  func.func @transform_6(%arg0: i32) -> (i32, i32) {
    %c0_i32 = arith.constant 0 : i32
    %c0_i32_0 = arith.constant 0 : i32
    %c0_i32_1 = arith.constant 0 : i32
    return %c0_i32, %c0_i32_0 : i32, i32
  }
  func.func @transform_7(%arg0: i32) -> (i32, i32) {
    %c0_i32 = arith.constant 0 : i32
    %c0_i32_0 = arith.constant 0 : i32
    %c0_i32_1 = arith.constant 0 : i32
    return %c0_i32, %c0_i32_0 : i32, i32
  }
  func.func @transform_8(%arg0: i32) -> (i32, i32) {
    %c0_i32 = arith.constant 0 : i32
    %c0_i32_0 = arith.constant 0 : i32
    %c0_i32_1 = arith.constant 0 : i32
    return %c0_i32, %c0_i32_0 : i32, i32
  }
  func.func @transform_9(%arg0: i32) -> (i32, i32) {
    %c0_i32 = arith.constant 0 : i32
    %c0_i32_0 = arith.constant 0 : i32
    return %c0_i32, %arg0 : i32, i32
  }
}

</mosaic_0001>

<llo_original>
// kernel: tpu_custom_call.1
$region0: #{tpu_custom_call.1}
  #allocation0 [shape = 'u32[]', space=smem, size = 0x4, offset = 0x4, fixed_abs, tag = 'smem constant byte address 0x4 - core index']
  #allocation1 [shape = 'u32[144,128]{1,0:T(1,128)}', space=vmem, size = 0x12000, scoped, tag = 'internal scratch']
  %s0 = inlined_call_operand.vmem [shape: f32[8,128], index: 0, kind: input, shape index: {}]
  %s1 = inlined_call_operand.vmem [shape: f32[32,8], index: 1, kind: input, shape index: {}]
  %s2 = inlined_call_operand.vmem [shape: f32[32,1], index: 2, kind: input, shape index: {}]
  %s3 = inlined_call_operand.vmem [shape: f32[32,32], index: 3, kind: input, shape index: {}]
  %s4 = inlined_call_operand.vmem [shape: f32[32,1], index: 4, kind: input, shape index: {}]
  %s5 = inlined_call_operand.vmem [shape: f32[32,32], index: 5, kind: input, shape index: {}]
  %s6 = inlined_call_operand.vmem [shape: f32[32,1], index: 6, kind: input, shape index: {}]
  %s7 = inlined_call_operand.vmem [shape: f32[8,32], index: 7, kind: input, shape index: {}]
  %s8 = inlined_call_operand.vmem [shape: f32[8,1], index: 8, kind: input, shape index: {}]
  %s9 = inlined_call_operand.hbm [shape: f32[8,128], index: 9, kind: output, shape index: {}]
  %s10 = sld [smem:[#allocation0]]
  $region46: #{tpu_custom_call.1} parent=0
    _
  %s12 = ssub.s32 1, %s10
  %s13 = scalar_select 0, %s12, %s10
  $region1: #{tpu_custom_call.1} parent=0
    #allocation2 [shape = 'u8[4096]{0}', space=vmem, size = 0x1000, scoped, tag = 'output window, operand 0, single buffered']
    #allocation3 [shape = 's32[1]{0}', space=sflag, size = 0x4, scoped, tag = 'scoped memory for tpu_custom_call.1']
    %14 = vsyncpa [#allocation3], 0
    // Predicated region
    $region2: #{tpu_custom_call.1} parent=1 // pred_check
      _
    $region3: #{tpu_custom_call.1} parent=1 // pred_check_branch
      %16 = sbr.rel (0) target = $region5
    $region4: #{tpu_custom_call.1} parent=1 // pred_region
      _
    $region5: #{tpu_custom_call.1} parent=1 // pred_fallthru
      _
    // Predicated region
    $region6: #{tpu_custom_call.1} parent=1 // pred_check
      _
    $region7: #{tpu_custom_call.1} parent=1 // pred_check_branch
      %18 = sbr.rel (0) target = $region9
    $region8: #{tpu_custom_call.1} parent=1 // pred_region
      _
    $region9: #{tpu_custom_call.1} parent=1 // pred_fallthru
      _
    // Predicated region
    $region10: #{tpu_custom_call.1} parent=1 // pred_check
      _
    $region11: #{tpu_custom_call.1} parent=1 // pred_check_branch
      %20 = sbr.rel (0) target = $region13
    $region12: #{tpu_custom_call.1} parent=1 // pred_region
      _
    $region13: #{tpu_custom_call.1} parent=1 // pred_fallthru
      _
    // Predicated region
    $region14: #{tpu_custom_call.1} parent=1 // pred_check
      _
    $region15: #{tpu_custom_call.1} parent=1 // pred_check_branch
      %22 = sbr.rel (0) target = $region17
    $region16: #{tpu_custom_call.1} parent=1 // pred_region
      _
    $region17: #{tpu_custom_call.1} parent=1 // pred_fallthru
      _
    // Predicated region
    $region18: #{tpu_custom_call.1} parent=1 // pred_check
      _
    $region19: #{tpu_custom_call.1} parent=1 // pred_check_branch
      %24 = sbr.rel (0) target = $region21
    $region20: #{tpu_custom_call.1} parent=1 // pred_region
      _
    $region21: #{tpu_custom_call.1} parent=1 // pred_fallthru
      _
    // Predicated region
    $region22: #{tpu_custom_call.1} parent=1 // pred_check
      _
    $region23: #{tpu_custom_call.1} parent=1 // pred_check_branch
      %26 = sbr.rel (0) target = $region25
    $region24: #{tpu_custom_call.1} parent=1 // pred_region
      _
    $region25: #{tpu_custom_call.1} parent=1 // pred_fallthru
      _
    // Predicated region
    $region26: #{tpu_custom_call.1} parent=1 // pred_check
      _
    $region27: #{tpu_custom_call.1} parent=1 // pred_check_branch
      %28 = sbr.rel (0) target = $region29
    $region28: #{tpu_custom_call.1} parent=1 // pred_region
      _
    $region29: #{tpu_custom_call.1} parent=1 // pred_fallthru
      _
    // Predicated region
    $region30: #{tpu_custom_call.1} parent=1 // pred_check
      _
    $region31: #{tpu_custom_call.1} parent=1 // pred_check_branch
      %30 = sbr.rel (0) target = $region33
    $region32: #{tpu_custom_call.1} parent=1 // pred_region
      _
    $region33: #{tpu_custom_call.1} parent=1 // pred_fallthru
      _
    // Predicated region
    $region34: #{tpu_custom_call.1} parent=1 // pred_check
      _
    $region35: #{tpu_custom_call.1} parent=1 // pred_check_branch
      %32 = sbr.rel (0) target = $region37
    $region36: #{tpu_custom_call.1} parent=1 // pred_region
      _
    $region37: #{tpu_custom_call.1} parent=1 // pred_fallthru
      _
    %v33 = vld [vmem:[%s1] sm:$0xff]
    %v34 = vld [vmem:[%s1 + $0x8] sm:$0xff]
    %v35 = vld [vmem:[%s1 + $0x10] sm:$0xff]
    %v36 = vld [vmem:[%s1 + $0x18] sm:$0xff]
    %v37 = vld [vmem:[%s0] sm:$0xff]
    %v38 = vld [vmem:[%s2] sm:$0xff]
    %v39 = vld [vmem:[%s2 + $0x8] sm:$0xff]
    %v40 = vld [vmem:[%s2 + $0x10] sm:$0xff]
    %v41 = vld [vmem:[%s2 + $0x18] sm:$0xff]
    %43 = vset.pattern.permute.xlu0 0
    %44 = vperm.xlu0 %43, %v38
    %v45 = vpop.permute.xlu0 %44
    %48 = vset.pattern.permute.xlu0 0
    %49 = vperm.xlu0 %48, %v39
    %v50 = vpop.permute.xlu0 %49
    %53 = vset.pattern.permute.xlu0 0
    %54 = vperm.xlu0 %53, %v40
    %v55 = vpop.permute.xlu0 %54
    %58 = vset.pattern.permute.xlu0 0
    %59 = vperm.xlu0 %58, %v41
    %v60 = vpop.permute.xlu0 %59
    %vm62 = vcmask 64512
    %v64 = vsel %vm62, %v33, 0
    %v67 = vsel %vm62, %v34, 0
    %v70 = vsel %vm62, %v35, 0
    %v73 = vsel %vm62, %v36, 0
    %75 = vmatprep.subr.mxu0 0.0
    %76 = vmatpush1.msra.mxu0 0.0
    %77 = vmatprep.subr.mxu0 0.0
    %78 = vmatpush1.msra.mxu0 0.0
    %79 = vmatprep.subr.mxu0 0.0
    %80 = vmatpush1.msra.mxu0 0.0
    %81 = vmatprep.subr.mxu0 0.0
    %82 = vmatpush1.msra.mxu0 0.0
    %83 = vmatprep.subr.mxu0 0.0
    %84 = vmatpush1.msra.mxu0 0.0
    %85 = vmatprep.subr.mxu0 0.0
    %86 = vmatpush1.msra.mxu0 0.0
    %87 = vmatprep.subr.mxu0 0.0
    %88 = vmatpush1.msra.mxu0 0.0
    %89 = vmatprep.subr.mxu0 0.0
    %90 = vmatpush1.msra.mxu0 0.0
    %91 = vmatprep.subr.mxu0 0.0
    %92 = vmatpush1.msra.mxu0 0.0
    %93 = vmatprep.subr.mxu0 0.0
    %94 = vmatpush1.msra.mxu0 0.0
    %95 = vmatprep.subr.mxu0 0.0
    %96 = vmatpush1.msra.mxu0 0.0
    %97 = vmatprep.subr.mxu0 0.0
    %98 = vmatpush1.msra.mxu0 0.0
    %99 = vmatprep.subr.mxu0 0.0
    %100 = vmatpush1.msra.mxu0 0.0
    %101 = vmatprep.subr.mxu0 0.0
    %102 = vmatpush1.msra.mxu0 0.0
    %103 = vmatprep.subr.mxu0 0.0
    %104 = vmatpush1.msra.mxu0 0.0
    %105 = vmatprep.subr.mxu0 0.0
    %106 = vmatpush1.msra.mxu0 %v37
    %107 = vmatprep.subr.mxu0 0.0
    %108 = vmatpush2.msra.mxu0 0.0
    %109 = vmatprep.subr.mxu0 0.0
    %110 = vmatpush2.msra.mxu0 0.0
    %111 = vmatprep.subr.mxu0 0.0
    %112 = vmatpush2.msra.mxu0 0.0
    %113 = vmatprep.subr.mxu0 0.0
    %114 = vmatpush2.msra.mxu0 0.0
    %115 = vmatprep.subr.mxu0 0.0
    %116 = vmatpush2.msra.mxu0 0.0
    %117 = vmatprep.subr.mxu0 0.0
    %118 = vmatpush2.msra.mxu0 0.0
    %119 = vmatprep.subr.mxu0 0.0
    %120 = vmatpush2.msra.mxu0 0.0
    %121 = vmatprep.subr.mxu0 0.0
    %122 = vmatpush2.msra.mxu0 0.0
    %123 = vmatprep.subr.mxu0 0.0
    %124 = vmatpush2.msra.mxu0 0.0
    %125 = vmatprep.subr.mxu0 0.0
    %126 = vmatpush2.msra.mxu0 0.0
    %127 = vmatprep.subr.mxu0 0.0
    %128 = vmatpush2.msra.mxu0 0.0
    %129 = vmatprep.subr.mxu0 0.0
    %130 = vmatpush2.msra.mxu0 0.0
    %131 = vmatprep.subr.mxu0 0.0
    %132 = vmatpush2.msra.mxu0 0.0
    %133 = vmatprep.subr.mxu0 0.0
    %134 = vmatpush2.msra.mxu0 0.0
    %135 = vmatprep.subr.mxu0 0.0
    %136 = vmatpush2.msra.mxu0 0.0
    %137 = vmatprep.subr.mxu0 0.0
    %138 = vmatpush2.msra.mxu0 0.0
    %139 = vmatprep.mubr.f32.mxu0 0.0
    %140 = vmatmul.mubr.f32.gmra.mxu0 %v64
    %v141 = vpop.f32.mrf.mxu0
    %v142 = vadd.f32 %v45, %v141
    %v143 = vpop.f32.mrf.mxu0
    %144 = vmatprep.mubr.f32.mxu0 0.0
    %145 = vmatmul.mubr.f32.gmra.mxu0 %v67
    %v146 = vpop.f32.mrf.mxu0
    %v147 = vadd.f32 %v50, %v146
    %v148 = vpop.f32.mrf.mxu0
    %149 = vmatprep.mubr.f32.mxu0 0.0
    %150 = vmatmul.mubr.f32.gmra.mxu0 %v70
    %v151 = vpop.f32.mrf.mxu0
    %v152 = vadd.f32 %v55, %v151
    %v153 = vpop.f32.mrf.mxu0
    %154 = vmatprep.mubr.f32.mxu0 0.0
    %155 = vmatmul.mubr.f32.gmra.mxu0 %v73
    %v156 = vpop.f32.mrf.mxu0
    %v157 = vadd.f32 %v60, %v156
    %v158 = vpop.f32.mrf.mxu0
    %159 = vdwg.mxu0
    %v160 = vmax.f32 %v142, 0.0
    %v161 = vmax.f32 %v147, 0.0
    %v162 = vmax.f32 %v152, 0.0
    %v163 = vmax.f32 %v157, 0.0
    %v164 = vsub.f32 %v142, 0.5
    %v165 = vsub.f32 %v147, 0.5
    %v166 = vsub.f32 %v152, 0.5
    %v167 = vsub.f32 %v157, 0.5
    %v168 = vmax.f32 %v164, 0.0
    %v169 = vmax.f32 %v165, 0.0
    %v170 = vmax.f32 %v166, 0.0
    %v171 = vmax.f32 %v167, 0.0
    %v172 = vmul.f32 %v160, %v160
    %v173 = vmul.f32 %v161, %v161
    %v174 = vmul.f32 %v162, %v162
    %v175 = vmul.f32 %v163, %v163
    %v176 = vmul.f32 %v168, %v168
    %v177 = vmul.f32 %v169, %v169
    %v178 = vmul.f32 %v170, %v170
    %v179 = vmul.f32 %v171, %v171
    %v180 = vsub.f32 %v172, %v176
    %v181 = vsub.f32 %v173, %v177
    %v182 = vsub.f32 %v174, %v178
    %v183 = vsub.f32 %v175, %v179
    %v184 = vld [vmem:[%s3] sm:$0xff]
    %v185 = vld [vmem:[%s3 + $0x8] sm:$0xff]
    %v186 = vld [vmem:[%s3 + $0x10] sm:$0xff]
    %v187 = vld [vmem:[%s3 + $0x18] sm:$0xff]
    %v188 = vld [vmem:[%s4] sm:$0xff]
    %v189 = vld [vmem:[%s4 + $0x8] sm:$0xff]
    %v190 = vld [vmem:[%s4 + $0x10] sm:$0xff]
    %v191 = vld [vmem:[%s4 + $0x18] sm:$0xff]
    %193 = vset.pattern.permute.xlu0 0
    %194 = vperm.xlu0 %193, %v188
    %v195 = vpop.permute.xlu0 %194
    %198 = vset.pattern.permute.xlu0 0
    %199 = vperm.xlu0 %198, %v189
    %v200 = vpop.permute.xlu0 %199
    %203 = vset.pattern.permute.xlu0 0
    %204 = vperm.xlu0 %203, %v190
    %v205 = vpop.permute.xlu0 %204
    %208 = vset.pattern.permute.xlu0 0
    %209 = vperm.xlu0 %208, %v191
    %v210 = vpop.permute.xlu0 %209
    %vm212 = vcmask 261120
    %v214 = vsel %vm212, %v184, 0
    %v217 = vsel %vm212, %v185, 0
    %v220 = vsel %vm212, %v186, 0
    %v223 = vsel %vm212, %v187, 0
    %225 = vmatprep.subr.mxu0 0.0
    %226 = vmatpush1.msra.mxu0 0.0
    %227 = vmatprep.subr.mxu0 0.0
    %228 = vmatpush1.msra.mxu0 0.0
    %229 = vmatprep.subr.mxu0 0.0
    %230 = vmatpush1.msra.mxu0 0.0
    %231 = vmatprep.subr.mxu0 0.0
    %232 = vmatpush1.msra.mxu0 0.0
    %233 = vmatprep.subr.mxu0 0.0
    %234 = vmatpush1.msra.mxu0 0.0
    %235 = vmatprep.subr.mxu0 0.0
    %236 = vmatpush1.msra.mxu0 0.0
    %237 = vmatprep.subr.mxu0 0.0
    %238 = vmatpush1.msra.mxu0 0.0
    %239 = vmatprep.subr.mxu0 0.0
    %240 = vmatpush1.msra.mxu0 0.0
    %241 = vmatprep.subr.mxu0 0.0
    %242 = vmatpush1.msra.mxu0 0.0
    %243 = vmatprep.subr.mxu0 0.0
    %244 = vmatpush1.msra.mxu0 0.0
    %245 = vmatprep.subr.mxu0 0.0
    %246 = vmatpush1.msra.mxu0 0.0
    %247 = vmatprep.subr.mxu0 0.0
    %248 = vmatpush1.msra.mxu0 0.0
    %249 = vmatprep.subr.mxu0 0.0
    %250 = vmatpush1.msra.mxu0 %v183
    %251 = vmatprep.subr.mxu0 0.0
    %252 = vmatpush1.msra.mxu0 %v182
    %253 = vmatprep.subr.mxu0 0.0
    %254 = vmatpush1.msra.mxu0 %v181
    %255 = vmatprep.subr.mxu0 0.0
    %256 = vmatpush1.msra.mxu0 %v180
    %257 = vmatprep.subr.mxu0 0.0
    %258 = vmatpush2.msra.mxu0 0.0
    %259 = vmatprep.subr.mxu0 0.0
    %260 = vmatpush2.msra.mxu0 0.0
    %261 = vmatprep.subr.mxu0 0.0
    %262 = vmatpush2.msra.mxu0 0.0
    %263 = vmatprep.subr.mxu0 0.0
    %264 = vmatpush2.msra.mxu0 0.0
    %265 = vmatprep.subr.mxu0 0.0
    %266 = vmatpush2.msra.mxu0 0.0
    %267 = vmatprep.subr.mxu0 0.0
    %268 = vmatpush2.msra.mxu0 0.0
    %269 = vmatprep.subr.mxu0 0.0
    %270 = vmatpush2.msra.mxu0 0.0
    %271 = vmatprep.subr.mxu0 0.0
    %272 = vmatpush2.msra.mxu0 0.0
    %273 = vmatprep.subr.mxu0 0.0
    %274 = vmatpush2.msra.mxu0 0.0
    %275 = vmatprep.subr.mxu0 0.0
    %276 = vmatpush2.msra.mxu0 0.0
    %277 = vmatprep.subr.mxu0 0.0
    %278 = vmatpush2.msra.mxu0 0.0
    %279 = vmatprep.subr.mxu0 0.0
    %280 = vmatpush2.msra.mxu0 0.0
    %281 = vmatprep.subr.mxu0 0.0
    %282 = vmatpush2.msra.mxu0 0.0
    %283 = vmatprep.subr.mxu0 0.0
    %284 = vmatpush2.msra.mxu0 0.0
    %285 = vmatprep.subr.mxu0 0.0
    %286 = vmatpush2.msra.mxu0 0.0
    %287 = vmatprep.subr.mxu0 0.0
    %288 = vmatpush2.msra.mxu0 0.0
    %289 = vmatprep.mubr.f32.mxu0 0.0
    %290 = vmatmul.mubr.f32.gmra.mxu0 %v214
    %v291 = vpop.f32.mrf.mxu0
    %v292 = vadd.f32 %v195, %v291
    %v293 = vpop.f32.mrf.mxu0
    %294 = vmatprep.mubr.f32.mxu0 0.0
    %295 = vmatmul.mubr.f32.gmra.mxu0 %v217
    %v296 = vpop.f32.mrf.mxu0
    %v297 = vadd.f32 %v200, %v296
    %v298 = vpop.f32.mrf.mxu0
    %299 = vmatprep.mubr.f32.mxu0 0.0
    %300 = vmatmul.mubr.f32.gmra.mxu0 %v220
    %v301 = vpop.f32.mrf.mxu0
    %v302 = vadd.f32 %v205, %v301
    %v303 = vpop.f32.mrf.mxu0
    %304 = vmatprep.mubr.f32.mxu0 0.0
    %305 = vmatmul.mubr.f32.gmra.mxu0 %v223
    %v306 = vpop.f32.mrf.mxu0
    %v307 = vadd.f32 %v210, %v306
    %v308 = vpop.f32.mrf.mxu0
    %309 = vdwg.mxu0
    %v310 = vmax.f32 %v292, 0.0
    %v311 = vmax.f32 %v297, 0.0
    %v312 = vmax.f32 %v302, 0.0
    %v313 = vmax.f32 %v307, 0.0
    %v314 = vsub.f32 %v292, 0.5
    %v315 = vsub.f32 %v297, 0.5
    %v316 = vsub.f32 %v302, 0.5
    %v317 = vsub.f32 %v307, 0.5
    %v318 = vmax.f32 %v314, 0.0
    %v319 = vmax.f32 %v315, 0.0
    %v320 = vmax.f32 %v316, 0.0
    %v321 = vmax.f32 %v317, 0.0
    %v322 = vmul.f32 %v310, %v310
    %v323 = vmul.f32 %v311, %v311
    %v324 = vmul.f32 %v312, %v312
    %v325 = vmul.f32 %v313, %v313
    %v326 = vmul.f32 %v318, %v318
    %v327 = vmul.f32 %v319, %v319
    %v328 = vmul.f32 %v320, %v320
    %v329 = vmul.f32 %v321, %v321
    %v330 = vsub.f32 %v322, %v326
    %v331 = vsub.f32 %v323, %v327
    %v332 = vsub.f32 %v324, %v328
    %v333 = vsub.f32 %v325, %v329
    %v334 = vadd.f32 %v330, %v180
    %v335 = vadd.f32 %v331, %v181
    %v336 = vadd.f32 %v332, %v182
    %v337 = vadd.f32 %v333, %v183
    %v338 = vld [vmem:[%s5] sm:$0xff]
    %v339 = vld [vmem:[%s5 + $0x8] sm:$0xff]
    %v340 = vld [vmem:[%s5 + $0x10] sm:$0xff]
    %v341 = vld [vmem:[%s5 + $0x18] sm:$0xff]
    %v342 = vld [vmem:[%s6] sm:$0xff]
    %v343 = vld [vmem:[%s6 + $0x8] sm:$0xff]
    %v344 = vld [vmem:[%s6 + $0x10] sm:$0xff]
    %v345 = vld [vmem:[%s6 + $0x18] sm:$0xff]
    %347 = vset.pattern.permute.xlu0 0
    %348 = vperm.xlu0 %347, %v342
    %v349 = vpop.permute.xlu0 %348
    %352 = vset.pattern.permute.xlu0 0
    %353 = vperm.xlu0 %352, %v343
    %v354 = vpop.permute.xlu0 %353
    %357 = vset.pattern.permute.xlu0 0
    %358 = vperm.xlu0 %357, %v344
    %v359 = vpop.permute.xlu0 %358
    %362 = vset.pattern.permute.xlu0 0
    %363 = vperm.xlu0 %362, %v345
    %v364 = vpop.permute.xlu0 %363
    %v367 = vsel %vm212, %v338, 0
    %v370 = vsel %vm212, %v339, 0
    %v373 = vsel %vm212, %v340, 0
    %v376 = vsel %vm212, %v341, 0
    %378 = vmatprep.subr.mxu0 0.0
    %379 = vmatpush1.msra.mxu0 0.0
    %380 = vmatprep.subr.mxu0 0.0
    %381 = vmatpush1.msra.mxu0 0.0
    %382 = vmatprep.subr.mxu0 0.0
    %383 = vmatpush1.msra.mxu0 0.0
    %384 = vmatprep.subr.mxu0 0.0
    %385 = vmatpush1.msra.mxu0 0.0
    %386 = vmatprep.subr.mxu0 0.0
    %387 = vmatpush1.msra.mxu0 0.0
    %388 = vmatprep.subr.mxu0 0.0
    %389 = vmatpush1.msra.mxu0 0.0
    %390 = vmatprep.subr.mxu0 0.0
    %391 = vmatpush1.msra.mxu0 0.0
    %392 = vmatprep.subr.mxu0 0.0
    %393 = vmatpush1.msra.mxu0 0.0
    %394 = vmatprep.subr.mxu0 0.0
    %395 = vmatpush1.msra.mxu0 0.0
    %396 = vmatprep.subr.mxu0 0.0
    %397 = vmatpush1.msra.mxu0 0.0
    %398 = vmatprep.subr.mxu0 0.0
    %399 = vmatpush1.msra.mxu0 0.0
    %400 = vmatprep.subr.mxu0 0.0
    %401 = vmatpush1.msra.mxu0 0.0
    %402 = vmatprep.subr.mxu0 0.0
    %403 = vmatpush1.msra.mxu0 %v337
    %404 = vmatprep.subr.mxu0 0.0
    %405 = vmatpush1.msra.mxu0 %v336
    %406 = vmatprep.subr.mxu0 0.0
    %407 = vmatpush1.msra.mxu0 %v335
    %408 = vmatprep.subr.mxu0 0.0
    %409 = vmatpush1.msra.mxu0 %v334
    %410 = vmatprep.subr.mxu0 0.0
    %411 = vmatpush2.msra.mxu0 0.0
    %412 = vmatprep.subr.mxu0 0.0
    %413 = vmatpush2.msra.mxu0 0.0
    %414 = vmatprep.subr.mxu0 0.0
    %415 = vmatpush2.msra.mxu0 0.0
    %416 = vmatprep.subr.mxu0 0.0
    %417 = vmatpush2.msra.mxu0 0.0
    %418 = vmatprep.subr.mxu0 0.0
    %419 = vmatpush2.msra.mxu0 0.0
    %420 = vmatprep.subr.mxu0 0.0
    %421 = vmatpush2.msra.mxu0 0.0
    %422 = vmatprep.subr.mxu0 0.0
    %423 = vmatpush2.msra.mxu0 0.0
    %424 = vmatprep.subr.mxu0 0.0
    %425 = vmatpush2.msra.mxu0 0.0
    %426 = vmatprep.subr.mxu0 0.0
    %427 = vmatpush2.msra.mxu0 0.0
    %428 = vmatprep.subr.mxu0 0.0
    %429 = vmatpush2.msra.mxu0 0.0
    %430 = vmatprep.subr.mxu0 0.0
    %431 = vmatpush2.msra.mxu0 0.0
    %432 = vmatprep.subr.mxu0 0.0
    %433 = vmatpush2.msra.mxu0 0.0
    %434 = vmatprep.subr.mxu0 0.0
    %435 = vmatpush2.msra.mxu0 0.0
    %436 = vmatprep.subr.mxu0 0.0
    %437 = vmatpush2.msra.mxu0 0.0
    %438 = vmatprep.subr.mxu0 0.0
    %439 = vmatpush2.msra.mxu0 0.0
    %440 = vmatprep.subr.mxu0 0.0
    %441 = vmatpush2.msra.mxu0 0.0
    %442 = vmatprep.mubr.f32.mxu0 0.0
    %443 = vmatmul.mubr.f32.gmra.mxu0 %v367
    %v444 = vpop.f32.mrf.mxu0
    %v445 = vadd.f32 %v349, %v444
    %v446 = vpop.f32.mrf.mxu0
    %447 = vmatprep.mubr.f32.mxu0 0.0
    %448 = vmatmul.mubr.f32.gmra.mxu0 %v370
    %v449 = vpop.f32.mrf.mxu0
    %v450 = vadd.f32 %v354, %v449
    %v451 = vpop.f32.mrf.mxu0
    %452 = vmatprep.mubr.f32.mxu0 0.0
    %453 = vmatmul.mubr.f32.gmra.mxu0 %v373
    %v454 = vpop.f32.mrf.mxu0
    %v455 = vadd.f32 %v359, %v454
    %v456 = vpop.f32.mrf.mxu0
    %457 = vmatprep.mubr.f32.mxu0 0.0
    %458 = vmatmul.mubr.f32.gmra.mxu0 %v376
    %v459 = vpop.f32.mrf.mxu0
    %v460 = vadd.f32 %v364, %v459
    %v461 = vpop.f32.mrf.mxu0
    %462 = vdwg.mxu0
    %v463 = vmax.f32 %v445, 0.0
    %v464 = vmax.f32 %v450, 0.0
    %v465 = vmax.f32 %v455, 0.0
    %v466 = vmax.f32 %v460, 0.0
    %v467 = vsub.f32 %v445, 0.5
    %v468 = vsub.f32 %v450, 0.5
    %v469 = vsub.f32 %v455, 0.5
    %v470 = vsub.f32 %v460, 0.5
    %v471 = vmax.f32 %v467, 0.0
    %v472 = vmax.f32 %v468, 0.0
    %v473 = vmax.f32 %v469, 0.0
    %v474 = vmax.f32 %v470, 0.0
    %v475 = vmul.f32 %v463, %v463
    %v476 = vmul.f32 %v464, %v464
    %v477 = vmul.f32 %v465, %v465
    %v478 = vmul.f32 %v466, %v466
    %v479 = vmul.f32 %v471, %v471
    %v480 = vmul.f32 %v472, %v472
    %v481 = vmul.f32 %v473, %v473
    %v482 = vmul.f32 %v474, %v474
    %v483 = vsub.f32 %v475, %v479
    %v484 = vsub.f32 %v476, %v480
    %v485 = vsub.f32 %v477, %v481
    %v486 = vsub.f32 %v478, %v482
    %v487 = vadd.f32 %v483, %v334
    %v488 = vadd.f32 %v484, %v335
    %v489 = vadd.f32 %v485, %v336
    %v490 = vadd.f32 %v486, %v337
    %v491 = vld [vmem:[%s7] sm:$0xff]
    %v492 = vld [vmem:[%s8] sm:$0xff]
    %494 = vset.pattern.permute.xlu0 0
    %495 = vperm.xlu0 %494, %v492
    %v496 = vpop.permute.xlu0 %495
    %v499 = vsel %vm212, %v491, 0
    %501 = vmatprep.subr.mxu0 0.0
    %502 = vmatpush1.msra.mxu0 0.0
    %503 = vmatprep.subr.mxu0 0.0
    %504 = vmatpush1.msra.mxu0 0.0
    %505 = vmatprep.subr.mxu0 0.0
    %506 = vmatpush1.msra.mxu0 0.0
    %507 = vmatprep.subr.mxu0 0.0
    %508 = vmatpush1.msra.mxu0 0.0
    %509 = vmatprep.subr.mxu0 0.0
    %510 = vmatpush1.msra.mxu0 0.0
    %511 = vmatprep.subr.mxu0 0.0
    %512 = vmatpush1.msra.mxu0 0.0
    %513 = vmatprep.subr.mxu0 0.0
    %514 = vmatpush1.msra.mxu0 0.0
    %515 = vmatprep.subr.mxu0 0.0
    %516 = vmatpush1.msra.mxu0 0.0
    %517 = vmatprep.subr.mxu0 0.0
    %518 = vmatpush1.msra.mxu0 0.0
    %519 = vmatprep.subr.mxu0 0.0
    %520 = vmatpush1.msra.mxu0 0.0
    %521 = vmatprep.subr.mxu0 0.0
    %522 = vmatpush1.msra.mxu0 0.0
    %523 = vmatprep.subr.mxu0 0.0
    %524 = vmatpush1.msra.mxu0 0.0
    %525 = vmatprep.subr.mxu0 0.0
    %526 = vmatpush1.msra.mxu0 %v490
    %527 = vmatprep.subr.mxu0 0.0
    %528 = vmatpush1.msra.mxu0 %v489
    %529 = vmatprep.subr.mxu0 0.0
    %530 = vmatpush1.msra.mxu0 %v488
    %531 = vmatprep.subr.mxu0 0.0
    %532 = vmatpush1.msra.mxu0 %v487
    %533 = vmatprep.subr.mxu0 0.0
    %534 = vmatpush2.msra.mxu0 0.0
    %535 = vmatprep.subr.mxu0 0.0
    %536 = vmatpush2.msra.mxu0 0.0
    %537 = vmatprep.subr.mxu0 0.0
    %538 = vmatpush2.msra.mxu0 0.0
    %539 = vmatprep.subr.mxu0 0.0
    %540 = vmatpush2.msra.mxu0 0.0
    %541 = vmatprep.subr.mxu0 0.0
    %542 = vmatpush2.msra.mxu0 0.0
    %543 = vmatprep.subr.mxu0 0.0
    %544 = vmatpush2.msra.mxu0 0.0
    %545 = vmatprep.subr.mxu0 0.0
    %546 = vmatpush2.msra.mxu0 0.0
    %547 = vmatprep.subr.mxu0 0.0
    %548 = vmatpush2.msra.mxu0 0.0
    %549 = vmatprep.subr.mxu0 0.0
    %550 = vmatpush2.msra.mxu0 0.0
    %551 = vmatprep.subr.mxu0 0.0
    %552 = vmatpush2.msra.mxu0 0.0
    %553 = vmatprep.subr.mxu0 0.0
    %554 = vmatpush2.msra.mxu0 0.0
    %555 = vmatprep.subr.mxu0 0.0
    %556 = vmatpush2.msra.mxu0 0.0
    %557 = vmatprep.subr.mxu0 0.0
    %558 = vmatpush2.msra.mxu0 0.0
    %559 = vmatprep.subr.mxu0 0.0
    %560 = vmatpush2.msra.mxu0 0.0
    %561 = vmatprep.subr.mxu0 0.0
    %562 = vmatpush2.msra.mxu0 0.0
    %563 = vmatprep.subr.mxu0 0.0
    %564 = vmatpush2.msra.mxu0 0.0
    %565 = vmatprep.mubr.f32.mxu0 0.0
    %566 = vmatmul.mubr.f32.gmra.mxu0 %v499
    %v567 = vpop.f32.mrf.mxu0
    %v568 = vadd.f32 %v496, %v567
    %v569 = vpop.f32.mrf.mxu0
    %570 = vdwg.mxu0
    %571 = vst [vmem:[#allocation2] sm:$0xff] %v568
    // Predicated region
    $region38: #{tpu_custom_call.1} parent=1 // pred_check
      _
    $region39: #{tpu_custom_call.1} parent=1 // pred_check_branch
      %573 = sbr.rel (0) target = $region41
    $region40: #{tpu_custom_call.1} parent=1 // pred_region
      %s575 = ssub.s32 128, 128
      %576 = vsyncadd [#allocation3], %s575
      %s578 = sshll.u32 [#allocation2], 4
      %s579 = int_to_ptr.vmem [resolvable:$true] %s578
      %581 = dma.vmem_to_hbm [thread:$0]  %s579, 128, %s9, [#allocation3]
    $region41: #{tpu_custom_call.1} parent=1 // pred_fallthru
      _
    // Predicated region
    $region42: #{tpu_custom_call.1} parent=1 // pred_check
      _
    $region43: #{tpu_custom_call.1} parent=1 // pred_check_branch
      %583 = sbr.rel (0) target = $region45
    $region44: #{tpu_custom_call.1} parent=1 // pred_region
      %584 = dma.done [#allocation3], 128
    $region45: #{tpu_custom_call.1} parent=1 // pred_fallthru
      _
    %585 = vsyncpa [#allocation3], 1

</llo_original>
